<compile_context>
chip_gen: v5e
topology: v5e:2x2
jax: 0.10.0
libtpu: 0.0.40
codegen_flags: <defaults>
</compile_context>

<pallas_src>
import jax
import jax.numpy as jnp
from jax.experimental import pallas as pl
from jax.experimental.pallas import tpu as pltpu


def model_kernel(x_ref, wb_ref, o_ref):
    # wb = [ W^T ; bias ]  ->  (IN+1, OUT).  Static row slices are free.
    w = wb_ref[:-1, :]      # (IN, OUT)
    b = wb_ref[-1:, :]      # (1,  OUT)
    v1 = jnp.dot(x_ref[...], w, preferred_element_type=jnp.float32) + b
    # Exact equivalent of the v2/v3/v4 chain (incl. NaN -> 0).
    o_ref[...] = jnp.where(v1 > 0.0, v1, 0.0).astype(o_ref.dtype)


def prepare_params(weight, bias):
    """Fold PyTorch-layout (OUT, IN) weight + (OUT,) bias into one (IN+1, OUT)
    array, done once at parameter-storage time (zero-cost layout plumbing)."""
    return jnp.concatenate([weight.T, bias[None, :]], axis=0)


def model_forward(x, wb, *, tb=4096):
    """x: (B, IN) f32; wb: (IN+1, OUT) f32 fused params."""
    B, IN = x.shape
    OUT = wb.shape[1]
    assert wb.shape[0] == IN + 1

    if B <= tb or B % tb != 0:
        # Small / irregular batch: whole arrays live in VMEM, no grid.
        vmem = pl.BlockSpec(memory_space=pltpu.MemorySpace.VMEM)
        return pl.pallas_call(
            model_kernel,
            out_shape=jax.ShapeDtypeStruct((B, OUT), jnp.float32),
            in_specs=[vmem, vmem],
            out_specs=vmem,
        )(x, wb)

    # Batched path: grid over B with large row tiles; params replicated
    # (resident) across steps.  Op is HBM-bandwidth-bound, so big tiles
    # amortize the ~0.35 us per-step overhead.
    return pl.pallas_call(
        model_kernel,
        out_shape=jax.ShapeDtypeStruct((B, OUT), jnp.float32),
        grid=(B // tb,),
        in_specs=[
            pl.BlockSpec((tb, IN), lambda i: (i, 0)),
            pl.BlockSpec((IN + 1, OUT), lambda i: (0, 0)),
        ],
        out_specs=pl.BlockSpec((tb, OUT), lambda i: (i, 0)),
        compiler_params=pltpu.CompilerParams(
            dimension_semantics=("parallel",)),
    )(x, wb)


if __name__ == "__main__":
    key = jax.random.PRNGKey(0)
    kx, kw, kb = jax.random.split(key, 3)

    B, IN, OUT = 1, 8, 8
    # Deterministic init mimicking PyTorch Linear's uniform(-1/sqrt(IN), ...).
    bound = 1.0 / jnp.sqrt(jnp.float32(IN))
    weight = jax.random.uniform(kw, (OUT, IN), jnp.float32, -bound, bound)
    bias = jax.random.uniform(kb, (OUT,), jnp.float32, -bound, bound)
    x1 = jax.random.normal(kx, (B, IN), jnp.float32)

    wb = prepare_params(weight, bias)          # stored fused, done once
    fwd = jax.jit(model_forward)               # fuse any wrapper ops + call
    out = jax.block_until_ready(fwd(x1, wb))

    # Pure-JAX reference with the original chain semantics.
    v1 = x1 @ weight.T + bias
    v2 = (v1 > 0).astype(jnp.float32)
    v3 = -1.0 / 100.0 * v2
    ref = jnp.where(v2 != 0.0, v1, v3)
    assert out.shape == (B, OUT)
    assert jnp.allclose(out, ref, atol=1e-5), (out, ref)

    print("KERNEL_OK")
</pallas_src>

<mosaic_0001>
module attributes {stable_mosaic.version = 11 : i64} {
  func.func @model_kernel(%arg0: memref<1x8xf32, #tpu.memory_space<vmem>>, %arg1: memref<9x8xf32, #tpu.memory_space<vmem>>, %arg2: memref<1x8xf32, #tpu.memory_space<vmem>>) attributes {dimension_semantics = [], scalar_prefetch = 0 : i64, scratch_operands = 0 : i64, tpu.core_type = #tpu.core_type<tc>} {
    %c0 = arith.constant 0 : index
    %c0_0 = arith.constant 0 : index
    %0 = vector.load %arg1[%c0, %c0_0] : memref<9x8xf32, #tpu.memory_space<vmem>>, vector<8x8xf32>
    %c8 = arith.constant 8 : index
    %c0_1 = arith.constant 0 : index
    %1 = vector.load %arg1[%c8, %c0_1] : memref<9x8xf32, #tpu.memory_space<vmem>>, vector<1x8xf32>
    %c0_2 = arith.constant 0 : index
    %c0_3 = arith.constant 0 : index
    %2 = vector.load %arg0[%c0_2, %c0_3] : memref<1x8xf32, #tpu.memory_space<vmem>>, vector<1x8xf32>
    %cst = arith.constant dense<0.000000e+00> : vector<1x8xf32>
    %3 = tpu.matmul %2, %0, %cst {dimension_numbers = #tpu.dot_dimension_numbers<[1], [0], [0], [1], [0, 0, 1, 1], [], []>} : vector<1x8xf32>, vector<8x8xf32>, vector<1x8xf32> -> vector<1x8xf32>
    %4 = arith.addf %3, %1 : vector<1x8xf32>
    %cst_4 = arith.constant 0.000000e+00 : f32
    %5 = vector.broadcast %cst_4 : f32 to vector<1x8xf32>
    %6 = arith.cmpf ogt, %4, %5 : vector<1x8xf32>
    %cst_5 = arith.constant 0.000000e+00 : f32
    %7 = vector.broadcast %cst_5 : f32 to vector<1x8xf32>
    %8 = arith.select %6, %4, %7 : vector<1x8xi1>, vector<1x8xf32>
    %c0_6 = arith.constant 0 : index
    %c0_7 = arith.constant 0 : index
    %9 = vector.load %arg2[%c0_6, %c0_7] : memref<1x8xf32, #tpu.memory_space<vmem>>, vector<1x8xf32>
    tpu.vector_store %arg2[%c0_6, %c0_7], %8 {strides = array<i32>} : memref<1x8xf32, #tpu.memory_space<vmem>>, vector<1x8xf32>,
    return
  }
}

</mosaic_0001>

<llo_original>
// kernel: model_forward.1
$region0: #{model_forward.1}
  #allocation0 [shape = 'u32[]', space=smem, size = 0x4, offset = 0x4, fixed_abs, tag = 'smem constant byte address 0x4 - core index']
  #allocation1 [shape = 'u32[72,128]{1,0:T(1,128)}', space=vmem, size = 0x9000, scoped, tag = 'internal scratch']
  %s0 = inlined_call_operand.vmem [shape: f32[1,8], index: 0, kind: input, shape index: {}]
  %s1 = inlined_call_operand.vmem [shape: f32[9,8], index: 1, kind: input, shape index: {}]
  %s2 = inlined_call_operand.hbm [shape: f32[1,8], index: 2, kind: output, shape index: {}]
  %s3 = sld [smem:[#allocation0]]
  $region18: #{model_forward.1} parent=0
    _
  %s5 = ssub.s32 1, %s3
  %s6 = scalar_select 0, %s5, %s3
  $region1: #{model_forward.1} parent=0
    #allocation2 [shape = 'u8[512]{0}', space=vmem, size = 0x400, scoped, tag = 'output window, operand 0, single buffered']
    #allocation3 [shape = 's32[1]{0}', space=sflag, size = 0x4, scoped, tag = 'scoped memory for model_forward.1']
    %7 = vsyncpa [#allocation3], 0
    // Predicated region
    $region2: #{model_forward.1} parent=1 // pred_check
      _
    $region3: #{model_forward.1} parent=1 // pred_check_branch
      %9 = sbr.rel (0) target = $region5
    $region4: #{model_forward.1} parent=1 // pred_region
      _
    $region5: #{model_forward.1} parent=1 // pred_fallthru
      _
    // Predicated region
    $region6: #{model_forward.1} parent=1 // pred_check
      _
    $region7: #{model_forward.1} parent=1 // pred_check_branch
      %11 = sbr.rel (0) target = $region9
    $region8: #{model_forward.1} parent=1 // pred_region
      _
    $region9: #{model_forward.1} parent=1 // pred_fallthru
      _
    %v12 = vld [vmem:[%s1] sm:$0xff]
    %v13 = vld [vmem:[%s1 + $0x8] sm:$0x1]
    %v14 = vld [vmem:[%s0] sm:$0x1]
    %vm15 = vcmask 64512
    %v17 = vsel %vm15, %v14, 0
    %19 = vmatpush.msra.mxu0 0.0
    %20 = vmatpush.msra.mxu0 0.0
    %21 = vmatpush.msra.mxu0 0.0
    %22 = vmatpush.msra.mxu0 0.0
    %23 = vmatpush.msra.mxu0 0.0
    %24 = vmatpush.msra.mxu0 0.0
    %25 = vmatpush.msra.mxu0 0.0
    %26 = vmatpush.msra.mxu0 0.0
    %27 = vmatpush.msra.mxu0 0.0
    %28 = vmatpush.msra.mxu0 0.0
    %29 = vmatpush.msra.mxu0 0.0
    %30 = vmatpush.msra.mxu0 0.0
    %31 = vmatpush.msra.mxu0 0.0
    %32 = vmatpush.msra.mxu0 0.0
    %33 = vmatpush.msra.mxu0 0.0
    %34 = vmatpush.msra.mxu0 %v12
    %35 = vmatmul.f32.gmra.mxu0 %v17
    %v36 = vpop.f32.mrf.mxu0
    %v37 = vadd.f32 %v13, %v36
    %38 = vdwg.mxu0
    %vm39 = vcmp.gt.f32.partialorder %v37, 0.0
    %v40 = vsel %vm39, %v37, 0.0
    %vm41 = vcmask 57344
    %42 = vst.msk [vmem:[#allocation2] sm:$0x1] %vm41, %v40
    // Predicated region
    $region10: #{model_forward.1} parent=1 // pred_check
      _
    $region11: #{model_forward.1} parent=1 // pred_check_branch
      %44 = sbr.rel (0) target = $region13
    $region12: #{model_forward.1} parent=1 // pred_region
      %46 = vsyncadd [#allocation3], 0
      %s48 = sshll.u32 [#allocation2], 4
      %s49 = int_to_ptr.vmem [resolvable:$true] %s48
      %s50 = sshll.u32 %s2, 4
      %s51 = int_to_ptr.hbm [resolvable:$true] %s50
      %53 = dma.vmem_to_hbm [thread:$0]  %s49, 16, %s51, [#allocation3]
    $region13: #{model_forward.1} parent=1 // pred_fallthru
      _
    // Predicated region
    $region14: #{model_forward.1} parent=1 // pred_check
      _
    $region15: #{model_forward.1} parent=1 // pred_check_branch
      %55 = sbr.rel (0) target = $region17
    $region16: #{model_forward.1} parent=1 // pred_region
      %57 = dma.done [#allocation3], 16
    $region17: #{model_forward.1} parent=1 // pred_fallthru
      _
    %58 = vsyncpa [#allocation3], 1

</llo_original>
